<compile_context>
chip_gen: v7x
topology: tpu7x:2x2x1
jax: 0.10.0
libtpu: 0.0.40
codegen_flags: <defaults>
</compile_context>

<pallas_src>
import functools
import math

import jax
import jax.numpy as jnp
from jax.experimental import pallas as pl
from jax.experimental.pallas import tpu as pltpu


def _maxpool1s_kernel(x_ref, o_ref, *, H, W, k, s, H_out, W_out):
    """One grid step: windowed max over a (TC, H, W) slab of N*C image slices.

    Replicate padding (right/bottom by k-1) == index-clamped window, so:
      * output rows 0..H_out-2 / cols 0..W_out-2 use fully in-bounds windows,
      * the last output row is max over input rows  [r_last, H-1],
      * the last output col is max over input cols  [c_last, W-1].
    No padded scratch, no concatenates; four partial stores cover the block.
    """
    x = x_ref[...]                                   # (TC, H, W)
    r_last = (H_out - 1) * s                         # first row of last window
    c_last = (W_out - 1) * s                         # first col of last window

    # ---- H-direction pass (second-to-last / sublane axis) ----
    h_head = None
    if H_out > 1:
        span_h = s * (H_out - 2) + 1
        h_head = x[:, 0:span_h:s, :]                 # (TC, H_out-1, W)
        for d in range(1, k):
            h_head = jnp.maximum(h_head, x[:, d:d + span_h:s, :])
    h_tail = x[:, r_last:r_last + 1, :]              # (TC, 1, W)
    for r in range(r_last + 1, H):                   # at most k-2 extra rows
        h_tail = jnp.maximum(h_tail, x[:, r:r + 1, :])

    # ---- W-direction pass (lane axis) + partial stores to the output ----
    def w_pass_and_store(h, r0, r1):
        if W_out > 1:
            span_w = s * (W_out - 2) + 1
            w_head = h[:, :, 0:span_w:s]
            for d in range(1, k):
                w_head = jnp.maximum(w_head, h[:, :, d:d + span_w:s])
            o_ref[:, r0:r1, 0:W_out - 1] = w_head.astype(o_ref.dtype)
        w_tail = h[:, :, c_last:c_last + 1]
        for c in range(c_last + 1, W):               # at most k-2 extra cols
            w_tail = jnp.maximum(w_tail, h[:, :, c:c + 1])
        o_ref[:, r0:r1, W_out - 1:W_out] = w_tail.astype(o_ref.dtype)

    if h_head is not None:
        w_pass_and_store(h_head, 0, H_out - 1)       # interior output rows
    w_pass_and_store(h_tail, H_out - 1, H_out)       # last output row


def _vmem_capacity_bytes():
    """Physical VMEM per TensorCore; conservative fallback if query fails."""
    try:
        cap = getattr(pltpu.get_tpu_info(), "vmem_capacity_bytes", None)
        if cap:
            return int(cap)
    except Exception:
        pass
    return 64 * 1024 * 1024                          # v7x per-core size (smallest)


def _choose_nc_tile(NC, H, W, H_out, W_out, itemsize, budget_bytes):
    """Pick TC, the number of (n, c) slices per grid step."""
    # Per-slice VMEM: double-buffered input & output blocks + the materialized
    # in-kernel temporaries (h_head/h_tail and the W-pass head).
    per_slice = itemsize * (2 * H * W + 2 * H_out * W_out
                            + H_out * W + H_out * W_out)
    tc = max(1, int(budget_bytes) // max(per_slice, 1))
    tc = min(tc, NC)
    if NC >= 2:
        # >= 2 grid blocks: both v7x TensorCores + pipeline overlap.
        tc = min(tc, (NC + 1) // 2)
    return max(tc, 1)


def maxpool1s(x, kernel_size):
    """Pallas TPU implementation of MaxPool1s.forward.

    x: (N, C, H, W) array (NCHW, like PyTorch).
    Semantics: replicate-pad right/bottom by k-1, then MaxPool2d(k, stride=k-1).
    """
    assert kernel_size >= 2, "kernel_size must be >= 2 (stride = k-1 must be > 0)"
    N, C, H, W = x.shape
    k = kernel_size
    pad = k - 1
    s = pad                                          # PyTorch: MaxPool2d(k, stride=k-1)
    H_out = (H + pad - k) // s + 1
    W_out = (W + pad - k) // s + 1
    NC = N * C

    x_nc = x.reshape(NC, H, W)                       # free reshape; stays NCHW in HBM

    itemsize = jnp.dtype(x.dtype).itemsize
    vmem_cap = _vmem_capacity_bytes()
    # Working-set budget per grid step + overall scoped-VMEM limit, per chip gen:
    # v5e/v6e (128 MiB) -> ~42 / 96 MiB; v7x (64 MiB) -> ~21 / 48 MiB.
    budget = min(vmem_cap // 3, 48 * 1024 * 1024)
    vmem_limit = min((vmem_cap * 3) // 4, 100 * 1024 * 1024)

    TC = _choose_nc_tile(NC, H, W, H_out, W_out, itemsize, budget)
    num_blocks = pl.cdiv(NC, TC)

    kernel = functools.partial(
        _maxpool1s_kernel, H=H, W=W, k=k, s=s, H_out=H_out, W_out=W_out,
    )

    out_nc = pl.pallas_call(
        kernel,
        out_shape=jax.ShapeDtypeStruct((NC, H_out, W_out), x.dtype),
        grid=(num_blocks,),
        in_specs=[pl.BlockSpec((TC, H, W), lambda i: (i, 0, 0))],
        out_specs=pl.BlockSpec((TC, H_out, W_out), lambda i: (i, 0, 0)),
        compiler_params=pltpu.CompilerParams(
            dimension_semantics=("parallel",),
            vmem_limit_bytes=int(vmem_limit),
        ),
    )(x_nc)

    return out_nc.reshape(N, C, H_out, W_out)


def _reference(x, kernel_size):
    """Pure-JAX reference (replicate pad right/bottom + strided window max)."""
    k = kernel_size
    pad = k - 1
    stride = pad
    N, C, H, W = x.shape
    xp = jnp.pad(x, ((0, 0), (0, 0), (0, pad), (0, pad)), mode="edge")
    H_out = (H + pad - k) // stride + 1
    W_out = (W + pad - k) // stride + 1
    acc = None
    for di in range(k):
        for dj in range(k):
            win = xp[:, :,
                     di:di + stride * (H_out - 1) + 1:stride,
                     dj:dj + stride * (W_out - 1) + 1:stride]
            acc = win if acc is None else jnp.maximum(acc, win)
    return acc


if __name__ == "__main__":
    key = jax.random.PRNGKey(0)
    N, C, H, W = 2, 4, 16, 16
    kernel_size = 2  # typical MaxPool1s usage: k=2 -> pad=1, stride=1

    x = jax.random.normal(key, (N, C, H, W), dtype=jnp.float32)

    out = maxpool1s(x, kernel_size)
    out = jax.block_until_ready(out)

    ref = _reference(x, kernel_size)
    assert out.shape == ref.shape, (out.shape, ref.shape)
    assert jnp.allclose(out, ref), "Pallas MaxPool1s mismatch vs reference"

    print("KERNEL_OK")
</pallas_src>

<mosaic_0001>
module attributes {stable_mosaic.version = 11 : i64} {
  func.func @_maxpool1s_kernel(%arg0: i32, %arg1: memref<4x16x16xf32, #tpu.memory_space<vmem>>, %arg2: memref<4x16x16xf32, #tpu.memory_space<vmem>>) attributes {dimension_semantics = [#tpu.dimension_semantics<parallel>], iteration_bounds = array<i64: 2>, scalar_prefetch = 0 : i64, scratch_operands = 0 : i64, tpu.core_type = #tpu.core_type<tc>, window_params = [{transform_indices = @transform_0, window_bounds = array<i64: 4, 16, 16>}, {transform_indices = @transform_1, window_bounds = array<i64: 4, 16, 16>}]} {
    %c0 = arith.constant 0 : index
    %c0_0 = arith.constant 0 : index
    %c0_1 = arith.constant 0 : index
    %0 = vector.load %arg1[%c0, %c0_0, %c0_1] : memref<4x16x16xf32, #tpu.memory_space<vmem>>, vector<4x16x16xf32>
    %1 = vector.extract_strided_slice %0 {offsets = [0, 0, 0], sizes = [4, 15, 16], strides = [1, 1, 1]} : vector<4x16x16xf32> to vector<4x15x16xf32>
    %2 = vector.extract_strided_slice %0 {offsets = [0, 1, 0], sizes = [4, 15, 16], strides = [1, 1, 1]} : vector<4x16x16xf32> to vector<4x15x16xf32>
    %3 = arith.maximumf %1, %2 : vector<4x15x16xf32>
    %4 = vector.extract_strided_slice %0 {offsets = [0, 15, 0], sizes = [4, 1, 16], strides = [1, 1, 1]} : vector<4x16x16xf32> to vector<4x1x16xf32>
    %5 = vector.extract_strided_slice %3 {offsets = [0, 0, 0], sizes = [4, 15, 15], strides = [1, 1, 1]} : vector<4x15x16xf32> to vector<4x15x15xf32>
    %6 = vector.extract_strided_slice %3 {offsets = [0, 0, 1], sizes = [4, 15, 15], strides = [1, 1, 1]} : vector<4x15x16xf32> to vector<4x15x15xf32>
    %7 = arith.maximumf %5, %6 : vector<4x15x15xf32>
    %c0_2 = arith.constant 0 : index
    %c0_3 = arith.constant 0 : index
    %c0_4 = arith.constant 0 : index
    %8 = vector.load %arg2[%c0_2, %c0_3, %c0_4] : memref<4x16x16xf32, #tpu.memory_space<vmem>>, vector<4x15x15xf32>
    tpu.vector_store %arg2[%c0_2, %c0_3, %c0_4], %7 {strides = array<i32>} : memref<4x16x16xf32, #tpu.memory_space<vmem>>, vector<4x15x15xf32>,
    %9 = vector.extract_strided_slice %3 {offsets = [0, 0, 15], sizes = [4, 15, 1], strides = [1, 1, 1]} : vector<4x15x16xf32> to vector<4x15x1xf32>
    %c0_5 = arith.constant 0 : index
    %c0_6 = arith.constant 0 : index
    %c15 = arith.constant 15 : index
    %10 = vector.load %arg2[%c0_5, %c0_6, %c15] : memref<4x16x16xf32, #tpu.memory_space<vmem>>, vector<4x15x1xf32>
    tpu.vector_store %arg2[%c0_5, %c0_6, %c15], %9 {strides = array<i32>} : memref<4x16x16xf32, #tpu.memory_space<vmem>>, vector<4x15x1xf32>,
    %11 = vector.extract_strided_slice %4 {offsets = [0, 0, 0], sizes = [4, 1, 15], strides = [1, 1, 1]} : vector<4x1x16xf32> to vector<4x1x15xf32>
    %12 = vector.extract_strided_slice %4 {offsets = [0, 0, 1], sizes = [4, 1, 15], strides = [1, 1, 1]} : vector<4x1x16xf32> to vector<4x1x15xf32>
    %13 = arith.maximumf %11, %12 : vector<4x1x15xf32>
    %c0_7 = arith.constant 0 : index
    %c15_8 = arith.constant 15 : index
    %c0_9 = arith.constant 0 : index
    %14 = vector.load %arg2[%c0_7, %c15_8, %c0_9] : memref<4x16x16xf32, #tpu.memory_space<vmem>>, vector<4x1x15xf32>
    tpu.vector_store %arg2[%c0_7, %c15_8, %c0_9], %13 {strides = array<i32>} : memref<4x16x16xf32, #tpu.memory_space<vmem>>, vector<4x1x15xf32>,
    %15 = vector.extract_strided_slice %4 {offsets = [0, 0, 15], sizes = [4, 1, 1], strides = [1, 1, 1]} : vector<4x1x16xf32> to vector<4x1x1xf32>
    %c0_10 = arith.constant 0 : index
    %c15_11 = arith.constant 15 : index
    %c15_12 = arith.constant 15 : index
    %16 = vector.load %arg2[%c0_10, %c15_11, %c15_12] : memref<4x16x16xf32, #tpu.memory_space<vmem>>, vector<4x1x1xf32>
    tpu.vector_store %arg2[%c0_10, %c15_11, %c15_12], %15 {strides = array<i32>} : memref<4x16x16xf32, #tpu.memory_space<vmem>>, vector<4x1x1xf32>,
    return
  }
  func.func @transform_0(%arg0: i32) -> (i32, i32, i32) {
    %c0_i32 = arith.constant 0 : i32
    %c0_i32_0 = arith.constant 0 : i32
    %c0_i32_1 = arith.constant 0 : i32
    return %arg0, %c0_i32, %c0_i32_0 : i32, i32, i32
  }
  func.func @transform_1(%arg0: i32) -> (i32, i32, i32) {
    %c0_i32 = arith.constant 0 : i32
    %c0_i32_0 = arith.constant 0 : i32
    %c0_i32_1 = arith.constant 0 : i32
    return %arg0, %c0_i32, %c0_i32_0 : i32, i32, i32
  }
}

</mosaic_0001>

<llo_original>
// kernel: tpu_custom_call.1
$region0: #{tpu_custom_call.1}
  #allocation0 [shape = 'u32[]', space=smem, size = 0x4, offset = 0x4, fixed_abs, tag = 'smem constant byte address 0x4 - core index']
  #allocation1 [shape = 'u32[144,128]{1,0:T(1,128)}', space=vmem, size = 0x12000, scoped, tag = 'internal scratch']
  %s0 = inlined_call_operand.hbm [shape: f32[8,16,16], index: 0, kind: input, shape index: {}]
  %s1 = inlined_call_operand.hbm [shape: f32[8,16,16], index: 1, kind: output, shape index: {}]
  %s2 = sld [smem:[#allocation0]]
  $region41: #{tpu_custom_call.1} parent=0
    _
  %s4 = ssub.s32 1, %s2
  %s5 = scalar_select 0, %s4, %s2
  $region1: #{tpu_custom_call.1} parent=0
    #allocation2 [shape = 'u8[65536]{0}', space=vmem, size = 0x10000, scoped, tag = 'input window, operand 0']
    #allocation3 [shape = 's32[2]{0}', space=sflag, size = 0x8, scoped, tag = 'scoped memory for tpu_custom_call.1']
    #allocation4 [shape = 's32[2]{0}', space=sflag, size = 0x8, scoped, tag = 'scoped memory for tpu_custom_call.1']
    #allocation5 [shape = 'u8[65536]{0}', space=vmem, size = 0x10000, scoped, tag = 'output window, operand 0']
    %6 = vsyncpa [#allocation3], 0
    %s7 = scalar_lea.sflag [#allocation3], 1
    %8 = vsyncpa %s7, 0
    %9 = vsyncpa [#allocation4], 0
    %s10 = scalar_lea.sflag [#allocation4], 1
    %11 = vsyncpa %s10, 0
    loop: start=0, step=1, limit=4
    $region2: #{tpu_custom_call.1} parent=1 // loop_pre_header
      _
    $region3: #{tpu_custom_call.1} parent=1 // loop_header
      %s13 = sphi 0, %s17
      %p14 = scmp.ge.s32.totalorder %s13, 4
      %s23 = sphi 0, %s25
      %s26 = sphi 0, %s23
      %s27 = sphi 0, %s26
      %s43 = sphi 0, %s27
      %s49 = sphi 0, %s51
      %s52 = sphi 0, %s49
      %s53 = sphi 0, %s52
      %s69 = sphi 0, %s53
    $region4: #{tpu_custom_call.1} parent=1 // loop_header_branch
      %16 = sbr.rel (%p14) target = $region8
    $region5: #{tpu_custom_call.1} parent=1 // loop_body
      %s18 = ssub.s32 %s13, 1
      %s19 = ssub.s32 %s13, 2
      %s20 = sadd.s32 %s13, 1
      %s21 = ssub.s32 %s13, %s20
      %p22 = scmp.eq.s32.totalorder %s21, 0
      %s24 = sadd.s32 %s23, 1
      %s25 = scalar_select %p22, %s23, %s24
      %p28 = pneg %p22
      %p29 = scmp.eq.s32.totalorder %s13, 1
      %p30 = por %p28, %p29
      %p31 = scmp.ne.s32.totalorder %s23, %s26
      %p32 = scmp.eq.s32.totalorder %s13, 0
      %p33 = por %p31, %p32
      %p34 = scmp.ne.s32.totalorder %s23, %s26
      %p35 = scmp.eq.s32.totalorder %s18, 1
      %p36 = por %p34, %p35
      %p37 = scmp.ne.s32.totalorder %s26, %s27
      %p38 = scmp.eq.s32.totalorder %s18, 0
      %p39 = por %p37, %p38
      %p40 = scmp.ne.s32.totalorder %s26, %s27
      %p41 = scmp.eq.s32.totalorder %s19, 1
      %p42 = por %p40, %p41
      %p44 = scmp.ne.s32.totalorder %s27, %s43
      %p45 = scmp.eq.s32.totalorder %s19, 0
      %p46 = por %p44, %p45
      %s47 = ssub.s32 %s13, %s20
      %p48 = scmp.eq.s32.totalorder %s47, 0
      %s50 = sadd.s32 %s49, 1
      %s51 = scalar_select %p48, %s49, %s50
      %p54 = pneg %p48
      %p55 = scmp.eq.s32.totalorder %s13, 1
      %p56 = por %p54, %p55
      %p57 = scmp.ne.s32.totalorder %s49, %s52
      %p58 = scmp.eq.s32.totalorder %s13, 0
      %p59 = por %p57, %p58
      %p60 = scmp.ne.s32.totalorder %s49, %s52
      %p61 = scmp.eq.s32.totalorder %s18, 1
      %p62 = por %p60, %p61
      %p63 = scmp.ne.s32.totalorder %s52, %s53
      %p64 = scmp.eq.s32.totalorder %s18, 0
      %p65 = por %p63, %p64
      %p66 = scmp.ne.s32.totalorder %s52, %s53
      %p67 = scmp.eq.s32.totalorder %s19, 1
      %p68 = por %p66, %p67
      %p70 = scmp.ne.s32.totalorder %s53, %s69
      %p71 = scmp.eq.s32.totalorder %s19, 0
      %p72 = por %p70, %p71
      %p73 = scmp.le.s32.totalorder 1, %s13
      %p74 = scmp.lt.s32.totalorder %s13, 3
      %p75 = pnand %p73, %p74
      %p76 = pneg %p75
      // Predicated region
      $region9: #{tpu_custom_call.1} parent=5 // pred_check
        _
      $region10: #{tpu_custom_call.1} parent=5 // pred_check_branch
        %78 = sbr.rel (%p75) target = $region12
      $region11: #{tpu_custom_call.1} parent=5 // pred_region
        %s79 = ssub.s32 %s13, 1
      $region12: #{tpu_custom_call.1} parent=5 // pred_fallthru
        _
      %p80 = scmp.lt.s32.totalorder %s13, 2
      // Predicated region
      $region13: #{tpu_custom_call.1} parent=5 // pred_check
        %p81 = pneg %p80
      $region14: #{tpu_custom_call.1} parent=5 // pred_check_branch
        %83 = sbr.rel (%p81) target = $region16
      $region15: #{tpu_custom_call.1} parent=5 // pred_region
        // Predicated region
        $region17: #{tpu_custom_call.1} parent=15 // pred_check
          %p84 = pneg %p33
        $region18: #{tpu_custom_call.1} parent=15 // pred_check_branch
          %86 = sbr.rel (%p84) target = $region20
        $region19: #{tpu_custom_call.1} parent=15 // pred_region
          %s87 = sand.u32 %s23, 1
          %s88 = scalar_lea.sflag [#allocation3], %s87
          %s89 = sand.u32 %s23, 1
          %s90 = smul.addr %s89, 64
          %s91 = scalar_lea.vmem [#allocation2], %s90
          %s92 = smul.u32 4, %s13
          %s94 = ssub.s32 1024, 1024
          %95 = vsyncadd %s88, %s94
          %s96 = smul.addr %s92, 2
          %s97 = smul.addr %s96, 128
          %s98 = scalar_lea.hbm %s0, %s97
          %s99 = sshll.u32 %s91, 4
          %s100 = int_to_ptr.vmem [resolvable:$true] %s99
          %105 = dma.hbm_to_vmem [thread:$0]  %s98, 1024, %s100, %s88, 128, 128, 8
        $region20: #{tpu_custom_call.1} parent=15 // pred_fallthru
          _
      $region16: #{tpu_custom_call.1} parent=5 // pred_fallthru
        _
      %p106 = scmp.le.s32.totalorder 1, %s13
      %p107 = scmp.lt.s32.totalorder %s13, 3
      %p108 = pnand %p106, %p107
      %p109 = pneg %p108
      // Predicated region
      $region21: #{tpu_custom_call.1} parent=5 // pred_check
        _
      $region22: #{tpu_custom_call.1} parent=5 // pred_check_branch
        %111 = sbr.rel (%p108) target = $region24
      $region23: #{tpu_custom_call.1} parent=5 // pred_region
        %s112 = ssub.s32 %s13, 1
        %s113 = sand.u32 %s26, 1
        %s114 = scalar_lea.sflag [#allocation3], %s113
        %s115 = sand.u32 %s26, 1
        %s116 = smul.addr %s115, 64
        %s117 = scalar_lea.vmem [#allocation2], %s116
        // Predicated region
        $region25: #{tpu_custom_call.1} parent=23 // pred_check
          %p118 = pneg %p39
        $region26: #{tpu_custom_call.1} parent=23 // pred_check_branch
          %120 = sbr.rel (%p118) target = $region28
        $region27: #{tpu_custom_call.1} parent=23 // pred_region
          %121 = dma.done %s114, 1024
        $region28: #{tpu_custom_call.1} parent=23 // pred_fallthru
          _
        %s122 = sand.u32 %s26, 1
        %s123 = scalar_lea.sflag [#allocation3], %s122
        %s124 = sand.u32 %s26, 1
        %s125 = smul.addr %s124, 64
        %s126 = scalar_lea.vmem [#allocation2], %s125
        %p127 = pneg %p39
        %p128 = pneg %p36
        %p129 = pneg %p65
        %p130 = pneg %p62
        %s131 = sand.u32 %s52, 1
        %s132 = scalar_lea.sflag [#allocation4], %s131
        %s133 = sand.u32 %s52, 1
        %s134 = smul.addr %s133, 64
        %s135 = scalar_lea.vmem [#allocation5], %s134
        %s136 = smul.u32 4, %s18
        %s137 = smul.u32 4, %s18
        %v138 = vld [vmem:[%s117] sm:$0xff]
        %v139 = vld [vmem:[%s117 + $0x8] sm:$0xff]
        %v140 = vld [vmem:[%s117 + $0x10] sm:$0xff]
        %v141 = vld [vmem:[%s117 + $0x18] sm:$0xff]
        %v142 = vld [vmem:[%s117 + $0x20] sm:$0xff]
        %v143 = vld [vmem:[%s117 + $0x28] sm:$0xff]
        %v144 = vld [vmem:[%s117 + $0x30] sm:$0xff]
        %v145 = vld [vmem:[%s117 + $0x38] sm:$0xff]
        %vm154 = vcmask 1046528
        %v155 = vrot.slane %v138, 1
        %v156 = vrot.slane %v139, 1
        %v157 = vsel %vm154, %v155, %v156
        %v158 = vrot.slane %v140, 1
        %v159 = vrot.slane %v141, 1
        %v160 = vsel %vm154, %v158, %v159
        %v161 = vrot.slane %v142, 1
        %v162 = vrot.slane %v143, 1
        %v163 = vsel %vm154, %v161, %v162
        %v164 = vrot.slane %v144, 1
        %v165 = vrot.slane %v145, 1
        %v166 = vsel %vm154, %v164, %v165
        %v175 = vmax.f32 %v138, %v157
        %v176 = vmax.f32 %v139, %v156
        %v177 = vmax.f32 %v140, %v160
        %v178 = vmax.f32 %v141, %v159
        %v179 = vmax.f32 %v142, %v163
        %v180 = vmax.f32 %v143, %v162
        %v181 = vmax.f32 %v144, %v166
        %v182 = vmax.f32 %v145, %v165
        %191 = vrot.lane.b32.xlu0 %v175, 127
        %v192 = vpop.permute.xlu0 %191
        %193 = vrot.lane.b32.xlu0 %v176, 127
        %v194 = vpop.permute.xlu0 %193
        %195 = vrot.lane.b32.xlu0 %v177, 127
        %v196 = vpop.permute.xlu0 %195
        %197 = vrot.lane.b32.xlu0 %v178, 127
        %v198 = vpop.permute.xlu0 %197
        %199 = vrot.lane.b32.xlu0 %v179, 127
        %v200 = vpop.permute.xlu0 %199
        %201 = vrot.lane.b32.xlu0 %v180, 127
        %v202 = vpop.permute.xlu0 %201
        %203 = vrot.lane.b32.xlu0 %v181, 127
        %v204 = vpop.permute.xlu0 %203
        %205 = vrot.lane.b32.xlu0 %v182, 127
        %v206 = vpop.permute.xlu0 %205
        %v215 = vmax.f32 %v175, %v192
        %v216 = vmax.f32 %v176, %v194
        %v217 = vmax.f32 %v177, %v196
        %v218 = vmax.f32 %v178, %v198
        %v219 = vmax.f32 %v179, %v200
        %v220 = vmax.f32 %v180, %v202
        %v221 = vmax.f32 %v181, %v204
        %v222 = vmax.f32 %v182, %v206
        %vm223 = vcmask 121856
        %224 = vst.msk [vmem:[%s135] sm:$0xff] %vm223, %v215
        %vm225 = vcmask 120832
        %226 = vst.msk [vmem:[%s135 + $0x8] sm:$0x7f] %vm225, %v216
        %227 = vst.msk [vmem:[%s135 + $0x10] sm:$0xff] %vm223, %v217
        %228 = vst.msk [vmem:[%s135 + $0x18] sm:$0x7f] %vm225, %v218
        %229 = vst.msk [vmem:[%s135 + $0x20] sm:$0xff] %vm223, %v219
        %230 = vst.msk [vmem:[%s135 + $0x28] sm:$0x7f] %vm225, %v220
        %231 = vst.msk [vmem:[%s135 + $0x30] sm:$0xff] %vm223, %v221
        %232 = vst.msk [vmem:[%s135 + $0x38] sm:$0x7f] %vm225, %v222
        %vm233 = vcmask 130168
        %234 = vst.msk [vmem:[%s135] sm:$0xff] %vm233, %v175
        %vm235 = vcmask 129144
        %236 = vst.msk [vmem:[%s135 + $0x8] sm:$0x7f] %vm235, %v176
        %237 = vst.msk [vmem:[%s135 + $0x10] sm:$0xff] %vm233, %v177
        %238 = vst.msk [vmem:[%s135 + $0x18] sm:$0x7f] %vm235, %v178
        %239 = vst.msk [vmem:[%s135 + $0x20] sm:$0xff] %vm233, %v179
        %240 = vst.msk [vmem:[%s135 + $0x28] sm:$0x7f] %vm235, %v180
        %241 = vst.msk [vmem:[%s135 + $0x30] sm:$0xff] %vm233, %v181
        %242 = vst.msk [vmem:[%s135 + $0x38] sm:$0x7f] %vm235, %v182
        %243 = vrot.lane.b32.xlu0 %v139, 127
        %v244 = vpop.permute.xlu0 %243
        %245 = vrot.lane.b32.xlu0 %v141, 127
        %v246 = vpop.permute.xlu0 %245
        %247 = vrot.lane.b32.xlu0 %v143, 127
        %v248 = vpop.permute.xlu0 %247
        %249 = vrot.lane.b32.xlu0 %v145, 127
        %v250 = vpop.permute.xlu0 %249
        %v255 = vmax.f32 %v139, %v244
        %v256 = vmax.f32 %v141, %v246
        %v257 = vmax.f32 %v143, %v248
        %v258 = vmax.f32 %v145, %v250
        %vm259 = vcmask 121863
        %260 = vst.msk [vmem:[%s135 + $0x8] sm:$0x80] %vm259, %v255
        %261 = vst.msk [vmem:[%s135 + $0x18] sm:$0x80] %vm259, %v256
        %262 = vst.msk [vmem:[%s135 + $0x28] sm:$0x80] %vm259, %v257
        %263 = vst.msk [vmem:[%s135 + $0x38] sm:$0x80] %vm259, %v258
        %vm264 = vcmask 130175
        %265 = vst.msk [vmem:[%s135 + $0x8] sm:$0x80] %vm264, %v139
        %266 = vst.msk [vmem:[%s135 + $0x18] sm:$0x80] %vm264, %v141
        %267 = vst.msk [vmem:[%s135 + $0x28] sm:$0x80] %vm264, %v143
        %268 = vst.msk [vmem:[%s135 + $0x38] sm:$0x80] %vm264, %v145
        %s269 = sand.u32 %s52, 1
        %s270 = scalar_lea.sflag [#allocation4], %s269
        %s271 = sand.u32 %s52, 1
        %s272 = smul.addr %s271, 64
        %s273 = scalar_lea.vmem [#allocation5], %s272
        // Predicated region
        $region29: #{tpu_custom_call.1} parent=23 // pred_check
          %p274 = pneg %p62
        $region30: #{tpu_custom_call.1} parent=23 // pred_check_branch
          %276 = sbr.rel (%p274) target = $region32
        $region31: #{tpu_custom_call.1} parent=23 // pred_region
          %s277 = smul.u32 4, %s18
          %s279 = ssub.s32 1024, 1024
          %280 = vsyncadd %s270, %s279
          %s281 = smul.addr %s277, 2
          %s282 = smul.addr %s281, 128
          %s283 = scalar_lea.hbm %s1, %s282
          %s284 = sshll.u32 %s273, 4
          %s285 = int_to_ptr.vmem [resolvable:$true] %s284
          %290 = dma.vmem_to_hbm [thread:$0]  %s285, 1024, %s283, %s270, 128, 128, 8
        $region32: #{tpu_custom_call.1} parent=23 // pred_fallthru
          _
      $region24: #{tpu_custom_call.1} parent=5 // pred_fallthru
        _
      %p291 = scmp.le.s32.totalorder 2, %s13
      // Predicated region
      $region33: #{tpu_custom_call.1} parent=5 // pred_check
        %p292 = pneg %p291
      $region34: #{tpu_custom_call.1} parent=5 // pred_check_branch
        %294 = sbr.rel (%p292) target = $region36
      $region35: #{tpu_custom_call.1} parent=5 // pred_region
        %s295 = ssub.s32 %s13, 2
        // Predicated region
        $region37: #{tpu_custom_call.1} parent=35 // pred_check
          %p296 = pneg %p68
        $region38: #{tpu_custom_call.1} parent=35 // pred_check_branch
          %298 = sbr.rel (%p296) target = $region40
        $region39: #{tpu_custom_call.1} parent=35 // pred_region
          %s299 = sand.u32 %s53, 1
          %s300 = scalar_lea.sflag [#allocation4], %s299
          %s301 = sand.u32 %s53, 1
          %s302 = smul.addr %s301, 64
          %s303 = scalar_lea.vmem [#allocation5], %s302
          %304 = dma.done %s300, 1024
        $region40: #{tpu_custom_call.1} parent=35 // pred_fallthru
          _
      $region36: #{tpu_custom_call.1} parent=5 // pred_fallthru
        _
    $region6: #{tpu_custom_call.1} parent=1 // loop_footer
      %s17 = sadd.s32 1, %s13
    $region7: #{tpu_custom_call.1} parent=1 // loop_footer_branch
      %12 = sbr.rel target = $region3
    $region8: #{tpu_custom_call.1} parent=1 // loop_exit
      _
    %305 = vsyncpa [#allocation3], 1
    %s306 = scalar_lea.sflag [#allocation3], 1
    %307 = vsyncpa %s306, 1
    %308 = vsyncpa [#allocation4], 1
    %s309 = scalar_lea.sflag [#allocation4], 1
    %310 = vsyncpa %s309, 1

</llo_original>
